<compile_context>
chip_gen: v5e
topology: v5e:2x2
jax: 0.10.0
libtpu: 0.0.40
codegen_flags: <defaults>
</compile_context>

<pallas_src>
import jax
import jax.numpy as jnp
from jax import lax
from jax.experimental import pallas as pl
from jax.experimental.pallas import tpu as pltpu


# --------------------------- parameter packing ------------------------------
def _pack_rows(segments):
    """Row-stack same-width 2-D segments, padding each to 8-row alignment so
    every segment starts on a sublane-tile boundary.
    Returns (packed_array, {name: start_row})."""
    parts, offsets, row = [], {}, 0
    for name, seg in segments:
        offsets[name] = row
        pad = (-seg.shape[0]) % 8
        parts.append(jnp.pad(seg, ((0, pad), (0, 0))) if pad else seg)
        row += seg.shape[0] + pad
    return jnp.concatenate(parts, axis=0), offsets


# ------------------------------ kernel wrapper ------------------------------
def partial_prediction_pallas(vis_repr, txt_repr, p):
    """vis_repr: (Bv, V) visual backbone output; txt_repr: (S, Hh) text
    last_hidden_state.  Returns (Bv, S, L) logits."""
    Bv, V = vis_repr.shape
    S, Hh = txt_repr.shape
    V2 = p["wp1"].shape[1]
    H2 = p["wt1"].shape[1]
    L = p["wo"].shape[1]
    assert V2 == H2, "parameter pack A assumes equal projection hidden widths"

    # Two packed parameter slabs (one 16-lane-wide, one 8-lane-wide).
    pack_a, oa = _pack_rows([
        ("wp1", p["wp1"]), ("wt1", p["wt1"]),
        ("bp1", p["bp1"]), ("bt1", p["bt1"]),
    ])
    pack_b, ob = _pack_rows([
        ("wp2", p["wp2"]), ("wt2", p["wt2"]), ("wo", p["wo"]),
        ("bp2", p["bp2"]), ("bt2", p["bt2"]), ("bo", p["bo"]),
        ("g_v", p["ln_g"][:, :L]), ("g_t", p["ln_g"][:, L:]),
        ("beta_v", p["ln_b"][:, :L]), ("beta_t", p["ln_b"][:, L:]),
    ])

    inv_2l = 0.5 / float(L)

    def kernel(vis_ref, txt_ref, pa_ref, pb_ref, o_ref):
        # ---- static slices into the packed parameter slabs -----------------
        wp1 = pa_ref[oa["wp1"]:oa["wp1"] + V, :]            # (V,  V2)
        wt1 = pa_ref[oa["wt1"]:oa["wt1"] + Hh, :]           # (Hh, H2)
        bp1 = pa_ref[oa["bp1"]:oa["bp1"] + 1, :]            # (1,  V2)
        bt1 = pa_ref[oa["bt1"]:oa["bt1"] + 1, :]            # (1,  H2)

        wp2 = pb_ref[ob["wp2"]:ob["wp2"] + V2, :]           # (V2, L)
        wt2 = pb_ref[ob["wt2"]:ob["wt2"] + H2, :]           # (H2, L)
        wo_v = pb_ref[ob["wo"]:ob["wo"] + L, :]             # (L, L)
        wo_t = pb_ref[ob["wo"] + L:ob["wo"] + 2 * L, :]     # (L, L)
        bp2 = pb_ref[ob["bp2"]:ob["bp2"] + 1, :]            # (1, L)
        bt2 = pb_ref[ob["bt2"]:ob["bt2"] + 1, :]            # (1, L)
        bo = pb_ref[ob["bo"]:ob["bo"] + 1, :]               # (1, L)
        g_v = pb_ref[ob["g_v"]:ob["g_v"] + 1, :]            # (1, L)
        g_t = pb_ref[ob["g_t"]:ob["g_t"] + 1, :]            # (1, L)
        be_v = pb_ref[ob["beta_v"]:ob["beta_v"] + 1, :]     # (1, L)
        be_t = pb_ref[ob["beta_t"]:ob["beta_t"] + 1, :]     # (1, L)

        def gelu(x):  # exact erf GELU (PyTorch nn.GELU default)
            return 0.5 * x * (1.0 + lax.erf(x * 0.7071067811865476))

        def softmax_rows(x):  # softmax over lanes; mul-by-reciprocal (exact)
            m = jnp.max(x, axis=-1, keepdims=True)
            e = jnp.exp(x - m)
            return e * pl.reciprocal(jnp.sum(e, axis=-1, keepdims=True),
                                     approx=False)

        # ---- projection MLPs, batched over all rows ------------------------
        vh = gelu(jnp.dot(vis_ref[...], wp1,
                          preferred_element_type=jnp.float32) + bp1)
        v = softmax_rows(jnp.dot(vh, wp2,
                                 preferred_element_type=jnp.float32) + bp2)  # (Bv, L)

        th = gelu(jnp.dot(txt_ref[...], wt1,
                          preferred_element_type=jnp.float32) + bt1)
        t = softmax_rows(jnp.dot(th, wt2,
                                 preferred_element_type=jnp.float32) + bt2)  # (S, L)

        # ---- LayerNorm(concat([v_b, t_s])) @ wo + bo, without the concat ---
        # For row pair (b, s):
        #   mu  = (sum(v_b) + sum(t_s)) / 2L
        #   var = (sum(v_b^2) + sum(t_s^2)) / 2L - mu^2
        #   out = r * (v_b*g_v @ wo_v + t_s*g_t @ wo_t - mu * u) + c0
        # with r = rsqrt(var+eps), u = g_v@wo_v + g_t@wo_t,
        #      c0 = beta_v@wo_v + beta_t@wo_t + bo.
        sv = jnp.sum(v, axis=-1, keepdims=True)              # (Bv, 1)
        st = jnp.sum(t, axis=-1, keepdims=True)              # (S, 1)
        qv = jnp.sum(v * v, axis=-1, keepdims=True)          # (Bv, 1)
        qt = jnp.sum(t * t, axis=-1, keepdims=True)          # (S, 1)

        proj_v = jnp.dot(v * g_v, wo_v,
                         preferred_element_type=jnp.float32)  # (Bv, L)
        proj_t = jnp.dot(t * g_t, wo_t,
                         preferred_element_type=jnp.float32)  # (S, L)
        u = (jnp.dot(g_v, wo_v, preferred_element_type=jnp.float32)
             + jnp.dot(g_t, wo_t, preferred_element_type=jnp.float32))   # (1, L)
        c0 = (jnp.dot(be_v, wo_v, preferred_element_type=jnp.float32)
              + jnp.dot(be_t, wo_t, preferred_element_type=jnp.float32)
              + bo)                                                       # (1, L)

        mu = (sv[:, None, :] + st[None, :, :]) * inv_2l      # (Bv, S, 1)
        ex2 = (qv[:, None, :] + qt[None, :, :]) * inv_2l     # (Bv, S, 1)
        r = lax.rsqrt(ex2 - mu * mu + 1e-5)                  # (Bv, S, 1)

        core = proj_v[:, None, :] + proj_t[None, :, :] - mu * u[None, :, :]
        # Dropout(0.3): identity in eval mode.
        # TODO(synk): training-mode dropout (pltpu.prng_*) not implemented.
        o_ref[...] = (r * core + c0[None, :, :]).astype(o_ref.dtype)

    grid_spec = pltpu.PrefetchScalarGridSpec(
        num_scalar_prefetch=0,
        grid=(1,),                      # single step: no per-row grid overhead
        in_specs=[
            pl.BlockSpec((Bv, V), lambda i: (0, 0)),
            pl.BlockSpec((S, Hh), lambda i: (0, 0)),
            pl.BlockSpec(pack_a.shape, lambda i: (0, 0)),
            pl.BlockSpec(pack_b.shape, lambda i: (0, 0)),
        ],
        out_specs=pl.BlockSpec((Bv, S, L), lambda i: (0, 0, 0)),
    )

    # NOTE: at production S/Hh sizes, tile S via a second ("parallel") grid
    # axis and set vmem_limit_bytes (v7x has only 64 MiB physical VMEM).  At
    # these shapes every block is a few KiB, so defaults are fine.
    return pl.pallas_call(
        kernel,
        out_shape=jax.ShapeDtypeStruct((Bv, S, L), jnp.float32),
        grid_spec=grid_spec,
        compiler_params=pltpu.CompilerParams(
            dimension_semantics=("arbitrary",)),
    )(vis_repr, txt_repr, pack_a, pack_b)


# ------------------------- plain-JAX reference path -------------------------
def reference_forward(vis_repr, txt_repr, p):
    def gelu(x):
        return 0.5 * x * (1.0 + lax.erf(x / jnp.sqrt(2.0)))

    vis = gelu(vis_repr @ p["wp1"] + p["bp1"]) @ p["wp2"] + p["bp2"]     # (Bv, L)
    txt = gelu(txt_repr @ p["wt1"] + p["bt1"]) @ p["wt2"] + p["bt2"]     # (S, L)
    vis_sm = jax.nn.softmax(vis, axis=-1)
    txt_sm = jax.nn.softmax(txt, axis=-1)
    Bv, L = vis_sm.shape
    S = txt_sm.shape[0]
    cat = jnp.concatenate(
        [jnp.broadcast_to(vis_sm[:, None, :], (Bv, S, L)),
         jnp.broadcast_to(txt_sm[None, :, :], (Bv, S, L))], axis=-1)      # (Bv, S, 2L)
    mu = jnp.mean(cat, axis=-1, keepdims=True)
    var = jnp.mean((cat - mu) ** 2, axis=-1, keepdims=True)
    xn = (cat - mu) * lax.rsqrt(var + 1e-5) * p["ln_g"][0] + p["ln_b"][0]
    return xn @ p["wo"] + p["bo"][0]


# ----------------------------------- main -----------------------------------
if __name__ == "__main__":
    # Small shapes implied by the forward pass.
    B, C, H, W = 2, 4, 16, 16          # visual_feats (NCHW)
    V, V2 = 32, 16                     # visual_model.output_size, //2
    S, E = 8, 16                       # text seq len, token-embedding dim
    Hh, H2 = 32, 16                    # text hidden_size, //2
    L = 8                              # num_labels

    key = jax.random.PRNGKey(0)
    ks = jax.random.split(key, 20)
    f = lambda k, shp, s=0.1: jax.random.normal(k, shp, jnp.float32) * s

    # Synthetic backbone parameters (plain-JAX glue).
    w_vis_backbone = f(ks[0], (C, V))
    w_txt_backbone = f(ks[1], (E, Hh))

    # Multimodal-head parameters (biases kept 2-D: (1, N)).
    params = {
        "wp1": f(ks[2], (V, V2)),  "bp1": f(ks[3], (1, V2)),
        "wp2": f(ks[4], (V2, L)),  "bp2": f(ks[5], (1, L)),
        "wt1": f(ks[6], (Hh, H2)), "bt1": f(ks[7], (1, H2)),
        "wt2": f(ks[8], (H2, L)),  "bt2": f(ks[9], (1, L)),
        "ln_g": 1.0 + f(ks[14], (1, 2 * L)),   # non-trivial affine to test LN path
        "ln_b": f(ks[15], (1, 2 * L)),
        "wo": f(ks[10], (2 * L, L)), "bo": f(ks[11], (1, L)),
    }

    # Inputs.
    visual_feats = jax.random.normal(ks[12], (B, C, H, W), jnp.float32)   # NCHW
    text_embeds = jax.random.normal(ks[13], (1, S, E), jnp.float32)       # batch-1 text

    # Backbone stand-ins (glue, plain JAX; the PyTorch module treats the
    # backbones as black boxes).
    vis_repr = jnp.mean(visual_feats, axis=(2, 3)) @ w_vis_backbone       # (B, V)
    txt_repr = (text_embeds @ w_txt_backbone)[0]                          # (S, Hh)

    out = partial_prediction_pallas(vis_repr, txt_repr, params)
    out = jax.block_until_ready(out)

    ref = reference_forward(vis_repr, txt_repr, params)
    assert out.shape == (B, S, L), out.shape
    err = float(jnp.max(jnp.abs(out - ref)))
    assert jnp.allclose(out, ref, rtol=1e-4, atol=1e-4), err

    print("KERNEL_OK")
</pallas_src>

<mosaic_0001>
module attributes {stable_mosaic.version = 11 : i64} {
  func.func @kernel(%arg0: i32, %arg1: memref<2x32xf32, #tpu.memory_space<vmem>>, %arg2: memref<8x32xf32, #tpu.memory_space<vmem>>, %arg3: memref<80x16xf32, #tpu.memory_space<vmem>>, %arg4: memref<104x8xf32, #tpu.memory_space<vmem>>, %arg5: memref<2x8x8xf32, #tpu.memory_space<vmem>>) attributes {dimension_semantics = [#tpu.dimension_semantics<arbitrary>], iteration_bounds = array<i64: 1>, scalar_prefetch = 0 : i64, scratch_operands = 0 : i64, tpu.core_type = #tpu.core_type<tc>, window_params = [{pipeline_mode = #tpu.pipeline_mode<synchronous>, transform_indices = @transform_0, window_bounds = array<i64: 2, 32>}, {pipeline_mode = #tpu.pipeline_mode<synchronous>, transform_indices = @transform_1, window_bounds = array<i64: 8, 32>}, {pipeline_mode = #tpu.pipeline_mode<synchronous>, transform_indices = @transform_2, window_bounds = array<i64: 80, 16>}, {pipeline_mode = #tpu.pipeline_mode<synchronous>, transform_indices = @transform_3, window_bounds = array<i64: 104, 8>}, {pipeline_mode = #tpu.pipeline_mode<synchronous>, transform_indices = @transform_4, window_bounds = array<i64: 2, 8, 8>}]} {
    %c0 = arith.constant 0 : index
    %c0_0 = arith.constant 0 : index
    %0 = vector.load %arg3[%c0, %c0_0] : memref<80x16xf32, #tpu.memory_space<vmem>>, vector<32x16xf32>
    %c32 = arith.constant 32 : index
    %c0_1 = arith.constant 0 : index
    %1 = vector.load %arg3[%c32, %c0_1] : memref<80x16xf32, #tpu.memory_space<vmem>>, vector<32x16xf32>
    %c64 = arith.constant 64 : index
    %c0_2 = arith.constant 0 : index
    %2 = vector.load %arg3[%c64, %c0_2] : memref<80x16xf32, #tpu.memory_space<vmem>>, vector<1x16xf32>
    %c72 = arith.constant 72 : index
    %c0_3 = arith.constant 0 : index
    %3 = vector.load %arg3[%c72, %c0_3] : memref<80x16xf32, #tpu.memory_space<vmem>>, vector<1x16xf32>
    %c0_4 = arith.constant 0 : index
    %c0_5 = arith.constant 0 : index
    %4 = vector.load %arg4[%c0_4, %c0_5] : memref<104x8xf32, #tpu.memory_space<vmem>>, vector<16x8xf32>
    %c16 = arith.constant 16 : index
    %c0_6 = arith.constant 0 : index
    %5 = vector.load %arg4[%c16, %c0_6] : memref<104x8xf32, #tpu.memory_space<vmem>>, vector<16x8xf32>
    %c32_7 = arith.constant 32 : index
    %c0_8 = arith.constant 0 : index
    %6 = vector.load %arg4[%c32_7, %c0_8] : memref<104x8xf32, #tpu.memory_space<vmem>>, vector<8x8xf32>
    %c40 = arith.constant 40 : index
    %c0_9 = arith.constant 0 : index
    %7 = vector.load %arg4[%c40, %c0_9] : memref<104x8xf32, #tpu.memory_space<vmem>>, vector<8x8xf32>
    %c48 = arith.constant 48 : index
    %c0_10 = arith.constant 0 : index
    %8 = vector.load %arg4[%c48, %c0_10] : memref<104x8xf32, #tpu.memory_space<vmem>>, vector<1x8xf32>
    %c56 = arith.constant 56 : index
    %c0_11 = arith.constant 0 : index
    %9 = vector.load %arg4[%c56, %c0_11] : memref<104x8xf32, #tpu.memory_space<vmem>>, vector<1x8xf32>
    %c64_12 = arith.constant 64 : index
    %c0_13 = arith.constant 0 : index
    %10 = vector.load %arg4[%c64_12, %c0_13] : memref<104x8xf32, #tpu.memory_space<vmem>>, vector<1x8xf32>
    %c72_14 = arith.constant 72 : index
    %c0_15 = arith.constant 0 : index
    %11 = vector.load %arg4[%c72_14, %c0_15] : memref<104x8xf32, #tpu.memory_space<vmem>>, vector<1x8xf32>
    %c80 = arith.constant 80 : index
    %c0_16 = arith.constant 0 : index
    %12 = vector.load %arg4[%c80, %c0_16] : memref<104x8xf32, #tpu.memory_space<vmem>>, vector<1x8xf32>
    %c88 = arith.constant 88 : index
    %c0_17 = arith.constant 0 : index
    %13 = vector.load %arg4[%c88, %c0_17] : memref<104x8xf32, #tpu.memory_space<vmem>>, vector<1x8xf32>
    %c96 = arith.constant 96 : index
    %c0_18 = arith.constant 0 : index
    %14 = vector.load %arg4[%c96, %c0_18] : memref<104x8xf32, #tpu.memory_space<vmem>>, vector<1x8xf32>
    %c0_19 = arith.constant 0 : index
    %c0_20 = arith.constant 0 : index
    %15 = vector.load %arg1[%c0_19, %c0_20] : memref<2x32xf32, #tpu.memory_space<vmem>>, vector<2x32xf32>
    %cst = arith.constant dense<0.000000e+00> : vector<2x16xf32>
    %16 = tpu.matmul %15, %0, %cst {dimension_numbers = #tpu.dot_dimension_numbers<[1], [0], [0], [1], [0, 0, 1, 1], [], []>} : vector<2x32xf32>, vector<32x16xf32>, vector<2x16xf32> -> vector<2x16xf32>
    %17 = vector.broadcast %2 : vector<1x16xf32> to vector<2x16xf32>
    %18 = arith.addf %16, %17 : vector<2x16xf32>
    %cst_21 = arith.constant 5.000000e-01 : f32
    %19 = vector.broadcast %cst_21 : f32 to vector<2x16xf32>
    %20 = arith.mulf %19, %18 : vector<2x16xf32>
    %cst_22 = arith.constant 0.707106769 : f32
    %21 = vector.broadcast %cst_22 : f32 to vector<2x16xf32>
    %22 = arith.mulf %18, %21 : vector<2x16xf32>
    %23 = math.erf %22 : vector<2x16xf32>
    %cst_23 = arith.constant 1.000000e+00 : f32
    %24 = vector.broadcast %cst_23 : f32 to vector<2x16xf32>
    %25 = arith.addf %24, %23 : vector<2x16xf32>
    %26 = arith.mulf %20, %25 : vector<2x16xf32>
    %cst_24 = arith.constant dense<0.000000e+00> : vector<2x8xf32>
    %27 = tpu.matmul %26, %4, %cst_24 {dimension_numbers = #tpu.dot_dimension_numbers<[1], [0], [0], [1], [0, 0, 1, 1], [], []>} : vector<2x16xf32>, vector<16x8xf32>, vector<2x8xf32> -> vector<2x8xf32>
    %28 = vector.broadcast %8 : vector<1x8xf32> to vector<2x8xf32>
    %29 = arith.addf %27, %28 : vector<2x8xf32>
    %cst_25 = arith.constant dense<0xFF800000> : vector<2xf32>
    %30 = vector.multi_reduction <maximumf>, %29, %cst_25 [1] : vector<2x8xf32> to vector<2xf32>
    %31 = vector.shape_cast %30 : vector<2xf32> to vector<2x1xf32>
    %32 = vector.broadcast %31 : vector<2x1xf32> to vector<2x8xf32>
    %33 = arith.subf %29, %32 : vector<2x8xf32>
    %34 = math.exp %33 : vector<2x8xf32>
    %cst_26 = arith.constant dense<0.000000e+00> : vector<2xf32>
    %35 = vector.multi_reduction <add>, %34, %cst_26 [1] : vector<2x8xf32> to vector<2xf32>
    %36 = vector.shape_cast %35 : vector<2xf32> to vector<2x1xf32>
    %37 = tpu.reciprocal %36 : vector<2x1xf32> -> vector<2x1xf32>
    %38 = vector.broadcast %37 : vector<2x1xf32> to vector<2x8xf32>
    %39 = arith.mulf %34, %38 : vector<2x8xf32>
    %c0_27 = arith.constant 0 : index
    %c0_28 = arith.constant 0 : index
    %40 = vector.load %arg2[%c0_27, %c0_28] : memref<8x32xf32, #tpu.memory_space<vmem>>, vector<8x32xf32>
    %cst_29 = arith.constant dense<0.000000e+00> : vector<8x16xf32>
    %41 = tpu.matmul %40, %1, %cst_29 {dimension_numbers = #tpu.dot_dimension_numbers<[1], [0], [0], [1], [0, 0, 1, 1], [], []>} : vector<8x32xf32>, vector<32x16xf32>, vector<8x16xf32> -> vector<8x16xf32>
    %42 = vector.broadcast %3 : vector<1x16xf32> to vector<8x16xf32>
    %43 = arith.addf %41, %42 : vector<8x16xf32>
    %cst_30 = arith.constant 5.000000e-01 : f32
    %44 = vector.broadcast %cst_30 : f32 to vector<8x16xf32>
    %45 = arith.mulf %44, %43 : vector<8x16xf32>
    %cst_31 = arith.constant 0.707106769 : f32
    %46 = vector.broadcast %cst_31 : f32 to vector<8x16xf32>
    %47 = arith.mulf %43, %46 : vector<8x16xf32>
    %48 = math.erf %47 : vector<8x16xf32>
    %cst_32 = arith.constant 1.000000e+00 : f32
    %49 = vector.broadcast %cst_32 : f32 to vector<8x16xf32>
    %50 = arith.addf %49, %48 : vector<8x16xf32>
    %51 = arith.mulf %45, %50 : vector<8x16xf32>
    %cst_33 = arith.constant dense<0.000000e+00> : vector<8x8xf32>
    %52 = tpu.matmul %51, %5, %cst_33 {dimension_numbers = #tpu.dot_dimension_numbers<[1], [0], [0], [1], [0, 0, 1, 1], [], []>} : vector<8x16xf32>, vector<16x8xf32>, vector<8x8xf32> -> vector<8x8xf32>
    %53 = vector.broadcast %9 : vector<1x8xf32> to vector<8x8xf32>
    %54 = arith.addf %52, %53 : vector<8x8xf32>
    %cst_34 = arith.constant dense<0xFF800000> : vector<8xf32>
    %55 = vector.multi_reduction <maximumf>, %54, %cst_34 [1] : vector<8x8xf32> to vector<8xf32>
    %56 = vector.shape_cast %55 : vector<8xf32> to vector<8x1xf32>
    %57 = vector.broadcast %56 : vector<8x1xf32> to vector<8x8xf32>
    %58 = arith.subf %54, %57 : vector<8x8xf32>
    %59 = math.exp %58 : vector<8x8xf32>
    %cst_35 = arith.constant dense<0.000000e+00> : vector<8xf32>
    %60 = vector.multi_reduction <add>, %59, %cst_35 [1] : vector<8x8xf32> to vector<8xf32>
    %61 = vector.shape_cast %60 : vector<8xf32> to vector<8x1xf32>
    %62 = tpu.reciprocal %61 : vector<8x1xf32> -> vector<8x1xf32>
    %63 = vector.broadcast %62 : vector<8x1xf32> to vector<8x8xf32>
    %64 = arith.mulf %59, %63 : vector<8x8xf32>
    %cst_36 = arith.constant dense<0.000000e+00> : vector<2xf32>
    %65 = vector.multi_reduction <add>, %39, %cst_36 [1] : vector<2x8xf32> to vector<2xf32>
    %66 = vector.shape_cast %65 : vector<2xf32> to vector<2x1xf32>
    %cst_37 = arith.constant dense<0.000000e+00> : vector<8xf32>
    %67 = vector.multi_reduction <add>, %64, %cst_37 [1] : vector<8x8xf32> to vector<8xf32>
    %68 = vector.shape_cast %67 : vector<8xf32> to vector<8x1xf32>
    %69 = arith.mulf %39, %39 : vector<2x8xf32>
    %cst_38 = arith.constant dense<0.000000e+00> : vector<2xf32>
    %70 = vector.multi_reduction <add>, %69, %cst_38 [1] : vector<2x8xf32> to vector<2xf32>
    %71 = vector.shape_cast %70 : vector<2xf32> to vector<2x1xf32>
    %72 = arith.mulf %64, %64 : vector<8x8xf32>
    %cst_39 = arith.constant dense<0.000000e+00> : vector<8xf32>
    %73 = vector.multi_reduction <add>, %72, %cst_39 [1] : vector<8x8xf32> to vector<8xf32>
    %74 = vector.shape_cast %73 : vector<8xf32> to vector<8x1xf32>
    %75 = vector.broadcast %11 : vector<1x8xf32> to vector<2x8xf32>
    %76 = arith.mulf %39, %75 : vector<2x8xf32>
    %cst_40 = arith.constant dense<0.000000e+00> : vector<2x8xf32>
    %77 = tpu.matmul %76, %6, %cst_40 {dimension_numbers = #tpu.dot_dimension_numbers<[1], [0], [0], [1], [0, 0, 1, 1], [], []>} : vector<2x8xf32>, vector<8x8xf32>, vector<2x8xf32> -> vector<2x8xf32>
    %78 = vector.broadcast %12 : vector<1x8xf32> to vector<8x8xf32>
    %79 = arith.mulf %64, %78 : vector<8x8xf32>
    %cst_41 = arith.constant dense<0.000000e+00> : vector<8x8xf32>
    %80 = tpu.matmul %79, %7, %cst_41 {dimension_numbers = #tpu.dot_dimension_numbers<[1], [0], [0], [1], [0, 0, 1, 1], [], []>} : vector<8x8xf32>, vector<8x8xf32>, vector<8x8xf32> -> vector<8x8xf32>
    %cst_42 = arith.constant dense<0.000000e+00> : vector<1x8xf32>
    %81 = tpu.matmul %11, %6, %cst_42 {dimension_numbers = #tpu.dot_dimension_numbers<[1], [0], [0], [1], [0, 0, 1, 1], [], []>} : vector<1x8xf32>, vector<8x8xf32>, vector<1x8xf32> -> vector<1x8xf32>
    %cst_43 = arith.constant dense<0.000000e+00> : vector<1x8xf32>
    %82 = tpu.matmul %12, %7, %cst_43 {dimension_numbers = #tpu.dot_dimension_numbers<[1], [0], [0], [1], [0, 0, 1, 1], [], []>} : vector<1x8xf32>, vector<8x8xf32>, vector<1x8xf32> -> vector<1x8xf32>
    %83 = arith.addf %81, %82 : vector<1x8xf32>
    %cst_44 = arith.constant dense<0.000000e+00> : vector<1x8xf32>
    %84 = tpu.matmul %13, %6, %cst_44 {dimension_numbers = #tpu.dot_dimension_numbers<[1], [0], [0], [1], [0, 0, 1, 1], [], []>} : vector<1x8xf32>, vector<8x8xf32>, vector<1x8xf32> -> vector<1x8xf32>
    %cst_45 = arith.constant dense<0.000000e+00> : vector<1x8xf32>
    %85 = tpu.matmul %14, %7, %cst_45 {dimension_numbers = #tpu.dot_dimension_numbers<[1], [0], [0], [1], [0, 0, 1, 1], [], []>} : vector<1x8xf32>, vector<8x8xf32>, vector<1x8xf32> -> vector<1x8xf32>
    %86 = arith.addf %84, %85 : vector<1x8xf32>
    %87 = arith.addf %86, %10 : vector<1x8xf32>
    %88 = vector.shape_cast %66 : vector<2x1xf32> to vector<2x1x1xf32>
    %89 = vector.shape_cast %68 : vector<8x1xf32> to vector<1x8x1xf32>
    %90 = vector.broadcast %88 : vector<2x1x1xf32> to vector<2x8x1xf32>
    %91 = vector.broadcast %89 : vector<1x8x1xf32> to vector<2x8x1xf32>
    %92 = arith.addf %90, %91 : vector<2x8x1xf32>
    %cst_46 = arith.constant 6.250000e-02 : f32
    %93 = vector.broadcast %cst_46 : f32 to vector<2x8x1xf32>
    %94 = arith.mulf %92, %93 : vector<2x8x1xf32>
    %95 = vector.shape_cast %71 : vector<2x1xf32> to vector<2x1x1xf32>
    %96 = vector.shape_cast %74 : vector<8x1xf32> to vector<1x8x1xf32>
    %97 = vector.broadcast %95 : vector<2x1x1xf32> to vector<2x8x1xf32>
    %98 = vector.broadcast %96 : vector<1x8x1xf32> to vector<2x8x1xf32>
    %99 = arith.addf %97, %98 : vector<2x8x1xf32>
    %cst_47 = arith.constant 6.250000e-02 : f32
    %100 = vector.broadcast %cst_47 : f32 to vector<2x8x1xf32>
    %101 = arith.mulf %99, %100 : vector<2x8x1xf32>
    %102 = arith.mulf %94, %94 : vector<2x8x1xf32>
    %103 = arith.subf %101, %102 : vector<2x8x1xf32>
    %cst_48 = arith.constant 9.99999974E-6 : f32
    %104 = vector.broadcast %cst_48 : f32 to vector<2x8x1xf32>
    %105 = arith.addf %103, %104 : vector<2x8x1xf32>
    %106 = math.rsqrt %105 : vector<2x8x1xf32>
    %107 = vector.shape_cast %77 : vector<2x8xf32> to vector<2x1x8xf32>
    %108 = vector.shape_cast %80 : vector<8x8xf32> to vector<1x8x8xf32>
    %109 = vector.broadcast %107 : vector<2x1x8xf32> to vector<2x8x8xf32>
    %110 = vector.broadcast %108 : vector<1x8x8xf32> to vector<2x8x8xf32>
    %111 = arith.addf %109, %110 : vector<2x8x8xf32>
    %112 = vector.shape_cast %83 : vector<1x8xf32> to vector<1x1x8xf32>
    %113 = vector.broadcast %94 : vector<2x8x1xf32> to vector<2x8x8xf32>
    %114 = vector.broadcast %112 : vector<1x1x8xf32> to vector<2x8x8xf32>
    %115 = arith.mulf %113, %114 : vector<2x8x8xf32>
    %116 = arith.subf %111, %115 : vector<2x8x8xf32>
    %117 = vector.broadcast %106 : vector<2x8x1xf32> to vector<2x8x8xf32>
    %118 = arith.mulf %117, %116 : vector<2x8x8xf32>
    %119 = vector.shape_cast %87 : vector<1x8xf32> to vector<1x1x8xf32>
    %120 = vector.broadcast %119 : vector<1x1x8xf32> to vector<2x8x8xf32>
    %121 = arith.addf %118, %120 : vector<2x8x8xf32>
    %c0_49 = arith.constant 0 : index
    %c0_50 = arith.constant 0 : index
    %c0_51 = arith.constant 0 : index
    %122 = vector.load %arg5[%c0_49, %c0_50, %c0_51] : memref<2x8x8xf32, #tpu.memory_space<vmem>>, vector<2x8x8xf32>
    tpu.vector_store %arg5[%c0_49, %c0_50, %c0_51], %121 {strides = array<i32>} : memref<2x8x8xf32, #tpu.memory_space<vmem>>, vector<2x8x8xf32>,
    return
  }
  func.func @transform_0(%arg0: i32) -> (i32, i32) {
    %c0_i32 = arith.constant 0 : i32
    %c0_i32_0 = arith.constant 0 : i32
    %c0_i32_1 = arith.constant 0 : i32
    return %c0_i32, %c0_i32_0 : i32, i32
  }
  func.func @transform_1(%arg0: i32) -> (i32, i32) {
    %c0_i32 = arith.constant 0 : i32
    %c0_i32_0 = arith.constant 0 : i32
    %c0_i32_1 = arith.constant 0 : i32
    return %c0_i32, %c0_i32_0 : i32, i32
  }
  func.func @transform_2(%arg0: i32) -> (i32, i32) {
    %c0_i32 = arith.constant 0 : i32
    %c0_i32_0 = arith.constant 0 : i32
    %c0_i32_1 = arith.constant 0 : i32
    return %c0_i32, %c0_i32_0 : i32, i32
  }
  func.func @transform_3(%arg0: i32) -> (i32, i32) {
    %c0_i32 = arith.constant 0 : i32
    %c0_i32_0 = arith.constant 0 : i32
    %c0_i32_1 = arith.constant 0 : i32
    return %c0_i32, %c0_i32_0 : i32, i32
  }
  func.func @transform_4(%arg0: i32) -> (i32, i32, i32) {
    %c0_i32 = arith.constant 0 : i32
    %c0_i32_0 = arith.constant 0 : i32
    %c0_i32_1 = arith.constant 0 : i32
    %c0_i32_2 = arith.constant 0 : i32
    return %c0_i32, %c0_i32_0, %c0_i32_1 : i32, i32, i32
  }
}

</mosaic_0001>

<llo_original>
// kernel: tpu_custom_call.1
$region0: #{tpu_custom_call.1}
  #allocation0 [shape = 'u32[]', space=smem, size = 0x4, offset = 0x4, fixed_abs, tag = 'smem constant byte address 0x4 - core index']
  #allocation1 [shape = 'u32[72,128]{1,0:T(1,128)}', space=vmem, size = 0x9000, scoped, tag = 'internal scratch']
  %s0 = inlined_call_operand.vmem [shape: f32[2,32], index: 0, kind: input, shape index: {}]
  %s1 = inlined_call_operand.vmem [shape: f32[8,32], index: 1, kind: input, shape index: {}]
  %s2 = inlined_call_operand.vmem [shape: f32[80,16], index: 2, kind: input, shape index: {}]
  %s3 = inlined_call_operand.vmem [shape: f32[104,8], index: 3, kind: input, shape index: {}]
  %s4 = inlined_call_operand.hbm [shape: f32[2,8,8], index: 4, kind: output, shape index: {}]
  %s5 = sld [smem:[#allocation0]]
  $region26: #{tpu_custom_call.1} parent=0
    _
  %s7 = ssub.s32 1, %s5
  %s8 = scalar_select 0, %s7, %s5
  $region1: #{tpu_custom_call.1} parent=0
    #allocation2 [shape = 'u8[8192]{0}', space=vmem, size = 0x2000, scoped, tag = 'output window, operand 0, single buffered']
    #allocation3 [shape = 's32[1]{0}', space=sflag, size = 0x4, scoped, tag = 'scoped memory for tpu_custom_call.1']
    %9 = vsyncpa [#allocation3], 0
    // Predicated region
    $region2: #{tpu_custom_call.1} parent=1 // pred_check
      _
    $region3: #{tpu_custom_call.1} parent=1 // pred_check_branch
      %11 = sbr.rel (0) target = $region5
    $region4: #{tpu_custom_call.1} parent=1 // pred_region
      _
    $region5: #{tpu_custom_call.1} parent=1 // pred_fallthru
      _
    // Predicated region
    $region6: #{tpu_custom_call.1} parent=1 // pred_check
      _
    $region7: #{tpu_custom_call.1} parent=1 // pred_check_branch
      %13 = sbr.rel (0) target = $region9
    $region8: #{tpu_custom_call.1} parent=1 // pred_region
      _
    $region9: #{tpu_custom_call.1} parent=1 // pred_fallthru
      _
    // Predicated region
    $region10: #{tpu_custom_call.1} parent=1 // pred_check
      _
    $region11: #{tpu_custom_call.1} parent=1 // pred_check_branch
      %15 = sbr.rel (0) target = $region13
    $region12: #{tpu_custom_call.1} parent=1 // pred_region
      _
    $region13: #{tpu_custom_call.1} parent=1 // pred_fallthru
      _
    // Predicated region
    $region14: #{tpu_custom_call.1} parent=1 // pred_check
      _
    $region15: #{tpu_custom_call.1} parent=1 // pred_check_branch
      %17 = sbr.rel (0) target = $region17
    $region16: #{tpu_custom_call.1} parent=1 // pred_region
      _
    $region17: #{tpu_custom_call.1} parent=1 // pred_fallthru
      _
    %v18 = vld [vmem:[%s2] sm:$0xff]
    %v19 = vld [vmem:[%s2 + $0x8] sm:$0xff]
    %v20 = vld [vmem:[%s2 + $0x10] sm:$0xff]
    %v21 = vld [vmem:[%s2 + $0x18] sm:$0xff]
    %v22 = vld [vmem:[%s2 + $0x20] sm:$0xff]
    %v23 = vld [vmem:[%s2 + $0x28] sm:$0xff]
    %v24 = vld [vmem:[%s2 + $0x30] sm:$0xff]
    %v25 = vld [vmem:[%s2 + $0x38] sm:$0xff]
    %v26 = vld [vmem:[%s2 + $0x40] sm:$0x1]
    %v27 = vld [vmem:[%s2 + $0x48] sm:$0x1]
    %v28 = vld [vmem:[%s3] sm:$0xff]
    %v29 = vld [vmem:[%s3 + $0x8] sm:$0xff]
    %v30 = vld [vmem:[%s3 + $0x10] sm:$0xff]
    %v31 = vld [vmem:[%s3 + $0x18] sm:$0xff]
    %v32 = vld [vmem:[%s3 + $0x20] sm:$0xff]
    %v33 = vld [vmem:[%s3 + $0x28] sm:$0xff]
    %v34 = vld [vmem:[%s3 + $0x30] sm:$0x1]
    %v35 = vld [vmem:[%s3 + $0x38] sm:$0x1]
    %v36 = vld [vmem:[%s3 + $0x40] sm:$0x1]
    %v37 = vld [vmem:[%s3 + $0x48] sm:$0x1]
    %v38 = vld [vmem:[%s3 + $0x50] sm:$0x1]
    %v39 = vld [vmem:[%s3 + $0x58] sm:$0x1]
    %v40 = vld [vmem:[%s3 + $0x60] sm:$0x1]
    %v41 = vld [vmem:[%s0] sm:$0x3]
    %v42 = vperm.slane %v26, 0
    %vm43 = vcmask 261120
    %v45 = vsel %vm43, %v41, 0
    %47 = vmatpush.msra.mxu0 0.0
    %48 = vmatpush.msra.mxu0 0.0
    %49 = vmatpush.msra.mxu0 0.0
    %50 = vmatpush.msra.mxu0 0.0
    %51 = vmatpush.msra.mxu0 0.0
    %52 = vmatpush.msra.mxu0 0.0
    %53 = vmatpush.msra.mxu0 0.0
    %54 = vmatpush.msra.mxu0 0.0
    %55 = vmatpush.msra.mxu0 0.0
    %56 = vmatpush.msra.mxu0 0.0
    %57 = vmatpush.msra.mxu0 0.0
    %58 = vmatpush.msra.mxu0 0.0
    %59 = vmatpush.msra.mxu0 %v21
    %60 = vmatpush.msra.mxu0 %v20
    %61 = vmatpush.msra.mxu0 %v19
    %62 = vmatpush.msra.mxu0 %v18
    %63 = vmatmul.f32.gmra.mxu0 %v45
    %v64 = vpop.f32.mrf.mxu0
    %v65 = vadd.f32 %v42, %v64
    %66 = vdwg.mxu0
    %v67 = vmul.f32 %v65, 0.5
    %v68 = vmul.f32 %v65, 0.70710677
    %v69 = vmul.f32 %v68, %v68
    %v70 = vmin.f32 16.0, %v69
    %v71 = vmul.f32 %v70, 2.1237322e-06
    %v72 = vadd.f32 %v71, 0.00028619796
    %v73 = vmul.f32 %v70, %v72
    %v74 = vadd.f32 %v73, 0.0036580483
    %v75 = vmul.f32 %v70, %v74
    %v76 = vadd.f32 %v75, 0.05243302
    %v77 = vmul.f32 %v70, %v76
    %v78 = vadd.f32 %v77, 0.18741608
    %v79 = vmul.f32 %v70, %v78
    %v80 = vadd.f32 %v79, 1.1283791
    %v81 = vmul.f32 %v68, %v80
    %v82 = vmul.f32 %v70, 3.8918573e-05
    %v83 = vadd.f32 %v82, 0.001143296
    %v84 = vmul.f32 %v70, %v83
    %v85 = vadd.f32 %v84, 0.014752088
    %v86 = vmul.f32 %v70, %v85
    %v87 = vadd.f32 %v86, 0.112945676
    %v88 = vmul.f32 %v70, %v87
    %v89 = vadd.f32 %v88, 0.4994258
    %v90 = vmul.f32 %v70, %v89
    %v91 = vadd.f32 %v90, 1.0
    %v92 = vrcp.pop %v91
    %v93 = vmul.f32 %v91, %v92
    %v94 = vsub.f32 1.0, %v93
    %v95 = vmul.f32 %v92, %v94
    %v96 = vadd.f32 %v92, %v95
    %vm97 = vweird.f32 %v91
    %vm98 = vweird.f32 %v92
    %vm99 = vmor %vm97, %vm98
    %v100 = vsel %vm99, %v92, %v96
    %v101 = vand.u32 2147483647, %v91
    %vm102 = vcmp.eq.f32.partialorder %v101, 8.507059e+37
    %v103 = vand.u32 %v91, 2147483648
    %v104 = vor.u32 1.1754944e-38, %v103
    %v105 = vsel %vm102, %v104, %v100
    %v106 = vmul.f32 %v81, %v105
    %v107 = vmin.f32 %v106, 1.0
    %v108 = vmax.f32 %v107, -1.0
    %v109 = vadd.f32 %v108, 1.0
    %v110 = vmul.f32 %v67, %v109
    %v111 = vperm.slane %v34, 0
    %vm112 = vcmask 130048
    %v114 = vsel %vm112, %v110, 0
    %116 = vmatpush.msra.mxu0 0.0
    %117 = vmatpush.msra.mxu0 0.0
    %118 = vmatpush.msra.mxu0 0.0
    %119 = vmatpush.msra.mxu0 0.0
    %120 = vmatpush.msra.mxu0 0.0
    %121 = vmatpush.msra.mxu0 0.0
    %122 = vmatpush.msra.mxu0 0.0
    %123 = vmatpush.msra.mxu0 0.0
    %124 = vmatpush.msra.mxu0 0.0
    %125 = vmatpush.msra.mxu0 0.0
    %126 = vmatpush.msra.mxu0 0.0
    %127 = vmatpush.msra.mxu0 0.0
    %128 = vmatpush.msra.mxu0 0.0
    %129 = vmatpush.msra.mxu0 0.0
    %130 = vmatpush.msra.mxu0 %v29
    %131 = vmatpush.msra.mxu0 %v28
    %132 = vmatmul.f32.gmra.mxu0 %v114
    %v133 = vpop.f32.mrf.mxu0
    %v134 = vadd.f32 %v111, %v133
    %135 = vdwg.mxu0
    %vm136 = vcmask 58368
    %v137 = vsel %vm136, %v134, -inf
    %138 = vmax.xlane.f32.xlu0 %v137
    %v139 = vpop.xlane.xlu0 %138
    %v140 = vsub.f32 %v134, %v139
    %v141 = vmul.f32 %v140, 1.442695
    %v142 = vpow.pop %v141
    %v143 = vsel %vm136, %v142, 0.0
    %144 = vadd.xlane.f32.xlu0 %v143
    %v145 = vpop.xlane.xlu0 %144
    %v146 = vrcp.pop %v145
    %v147 = vmul.f32 %v145, %v146
    %v148 = vsub.f32 1.0, %v147
    %v149 = vmul.f32 %v146, %v148
    %v150 = vadd.f32 %v146, %v149
    %vm151 = vweird.f32 %v145
    %vm152 = vweird.f32 %v146
    %vm153 = vmor %vm151, %vm152
    %v154 = vsel %vm153, %v146, %v150
    %v155 = vand.u32 2147483647, %v145
    %vm156 = vcmp.eq.f32.partialorder %v155, 8.507059e+37
    %v157 = vand.u32 %v145, 2147483648
    %v158 = vor.u32 1.1754944e-38, %v157
    %v159 = vsel %vm156, %v158, %v154
    %v160 = vmul.f32 %v142, %v159
    %v161 = vld [vmem:[%s1] sm:$0xff]
    %v162 = vperm.slane %v27, 0
    %v164 = vsel %vm43, %v161, 0
    %166 = vmatpush.msra.mxu0 0.0
    %167 = vmatpush.msra.mxu0 0.0
    %168 = vmatpush.msra.mxu0 0.0
    %169 = vmatpush.msra.mxu0 0.0
    %170 = vmatpush.msra.mxu0 0.0
    %171 = vmatpush.msra.mxu0 0.0
    %172 = vmatpush.msra.mxu0 0.0
    %173 = vmatpush.msra.mxu0 0.0
    %174 = vmatpush.msra.mxu0 0.0
    %175 = vmatpush.msra.mxu0 0.0
    %176 = vmatpush.msra.mxu0 0.0
    %177 = vmatpush.msra.mxu0 0.0
    %178 = vmatpush.msra.mxu0 %v25
    %179 = vmatpush.msra.mxu0 %v24
    %180 = vmatpush.msra.mxu0 %v23
    %181 = vmatpush.msra.mxu0 %v22
    %182 = vmatmul.f32.gmra.mxu0 %v164
    %v183 = vpop.f32.mrf.mxu0
    %v184 = vadd.f32 %v162, %v183
    %185 = vdwg.mxu0
    %v186 = vmul.f32 %v184, 0.5
    %v187 = vmul.f32 %v184, 0.70710677
    %v188 = vmul.f32 %v187, %v187
    %v189 = vmin.f32 16.0, %v188
    %v190 = vmul.f32 %v189, 2.1237322e-06
    %v191 = vadd.f32 %v190, 0.00028619796
    %v192 = vmul.f32 %v189, %v191
    %v193 = vadd.f32 %v192, 0.0036580483
    %v194 = vmul.f32 %v189, %v193
    %v195 = vadd.f32 %v194, 0.05243302
    %v196 = vmul.f32 %v189, %v195
    %v197 = vadd.f32 %v196, 0.18741608
    %v198 = vmul.f32 %v189, %v197
    %v199 = vadd.f32 %v198, 1.1283791
    %v200 = vmul.f32 %v187, %v199
    %v201 = vmul.f32 %v189, 3.8918573e-05
    %v202 = vadd.f32 %v201, 0.001143296
    %v203 = vmul.f32 %v189, %v202
    %v204 = vadd.f32 %v203, 0.014752088
    %v205 = vmul.f32 %v189, %v204
    %v206 = vadd.f32 %v205, 0.112945676
    %v207 = vmul.f32 %v189, %v206
    %v208 = vadd.f32 %v207, 0.4994258
    %v209 = vmul.f32 %v189, %v208
    %v210 = vadd.f32 %v209, 1.0
    %v211 = vrcp.pop %v210
    %v212 = vmul.f32 %v210, %v211
    %v213 = vsub.f32 1.0, %v212
    %v214 = vmul.f32 %v211, %v213
    %v215 = vadd.f32 %v211, %v214
    %vm216 = vweird.f32 %v210
    %vm217 = vweird.f32 %v211
    %vm218 = vmor %vm216, %vm217
    %v219 = vsel %vm218, %v211, %v215
    %v220 = vand.u32 2147483647, %v210
    %vm221 = vcmp.eq.f32.partialorder %v220, 8.507059e+37
    %v222 = vand.u32 %v210, 2147483648
    %v223 = vor.u32 1.1754944e-38, %v222
    %v224 = vsel %vm221, %v223, %v219
    %v225 = vmul.f32 %v200, %v224
    %v226 = vmin.f32 %v225, 1.0
    %v227 = vmax.f32 %v226, -1.0
    %v228 = vadd.f32 %v227, 1.0
    %v229 = vmul.f32 %v186, %v228
    %v230 = vperm.slane %v35, 0
    %v232 = vsel %vm112, %v229, 0
    %234 = vmatpush.msra.mxu0 0.0
    %235 = vmatpush.msra.mxu0 0.0
    %236 = vmatpush.msra.mxu0 0.0
    %237 = vmatpush.msra.mxu0 0.0
    %238 = vmatpush.msra.mxu0 0.0
    %239 = vmatpush.msra.mxu0 0.0
    %240 = vmatpush.msra.mxu0 0.0
    %241 = vmatpush.msra.mxu0 0.0
    %242 = vmatpush.msra.mxu0 0.0
    %243 = vmatpush.msra.mxu0 0.0
    %244 = vmatpush.msra.mxu0 0.0
    %245 = vmatpush.msra.mxu0 0.0
    %246 = vmatpush.msra.mxu0 0.0
    %247 = vmatpush.msra.mxu0 0.0
    %248 = vmatpush.msra.mxu0 %v31
    %249 = vmatpush.msra.mxu0 %v30
    %250 = vmatmul.f32.gmra.mxu0 %v232
    %v251 = vpop.f32.mrf.mxu0
    %v252 = vadd.f32 %v230, %v251
    %253 = vdwg.mxu0
    %vm254 = vcmask 64512
    %v255 = vsel %vm254, %v252, -inf
    %256 = vmax.xlane.f32.xlu0 %v255
    %v257 = vpop.xlane.xlu0 %256
    %v258 = vsub.f32 %v252, %v257
    %v259 = vmul.f32 %v258, 1.442695
    %v260 = vpow.pop %v259
    %v261 = vsel %vm254, %v260, 0.0
    %262 = vadd.xlane.f32.xlu0 %v261
    %v263 = vpop.xlane.xlu0 %262
    %v264 = vrcp.pop %v263
    %v265 = vmul.f32 %v263, %v264
    %v266 = vsub.f32 1.0, %v265
    %v267 = vmul.f32 %v264, %v266
    %v268 = vadd.f32 %v264, %v267
    %vm269 = vweird.f32 %v263
    %vm270 = vweird.f32 %v264
    %vm271 = vmor %vm269, %vm270
    %v272 = vsel %vm271, %v264, %v268
    %v273 = vand.u32 2147483647, %v263
    %vm274 = vcmp.eq.f32.partialorder %v273, 8.507059e+37
    %v275 = vand.u32 %v263, 2147483648
    %v276 = vor.u32 1.1754944e-38, %v275
    %v277 = vsel %vm274, %v276, %v272
    %v278 = vmul.f32 %v260, %v277
    %v279 = vsel %vm136, %v160, 0.0
    %280 = vadd.xlane.f32.xlu0 %v279
    %v281 = vpop.xlane.xlu0 %280
    %v282 = vsel %vm254, %v278, 0.0
    %283 = vadd.xlane.f32.xlu0 %v282
    %v284 = vpop.xlane.xlu0 %283
    %v285 = vmul.f32 %v160, %v160
    %v286 = vsel %vm136, %v285, 0.0
    %287 = vadd.xlane.f32.xlu0 %v286
    %v288 = vpop.xlane.xlu0 %287
    %v289 = vmul.f32 %v278, %v278
    %v290 = vsel %vm254, %v289, 0.0
    %291 = vadd.xlane.f32.xlu0 %v290
    %v292 = vpop.xlane.xlu0 %291
    %v293 = vperm.slane %v37, 0
    %v294 = vmul.f32 %v160, %v293
    %v296 = vsel %vm254, %v294, 0
    %298 = vmatpush.msra.mxu0 0.0
    %299 = vmatpush.msra.mxu0 0.0
    %300 = vmatpush.msra.mxu0 0.0
    %301 = vmatpush.msra.mxu0 0.0
    %302 = vmatpush.msra.mxu0 0.0
    %303 = vmatpush.msra.mxu0 0.0
    %304 = vmatpush.msra.mxu0 0.0
    %305 = vmatpush.msra.mxu0 0.0
    %306 = vmatpush.msra.mxu0 0.0
    %307 = vmatpush.msra.mxu0 0.0
    %308 = vmatpush.msra.mxu0 0.0
    %309 = vmatpush.msra.mxu0 0.0
    %310 = vmatpush.msra.mxu0 0.0
    %311 = vmatpush.msra.mxu0 0.0
    %312 = vmatpush.msra.mxu0 0.0
    %313 = vmatpush.msra.mxu0 %v32
    %314 = vmatmul.f32.gmra.mxu0 %v296
    %v315 = vpop.f32.mrf.mxu0
    %v316 = vadd.f32 0.0, %v315
    %317 = vdwg.mxu0
    %v318 = vperm.slane %v38, 0
    %v319 = vmul.f32 %v278, %v318
    %v321 = vsel %vm254, %v319, 0
    %323 = vmatpush.msra.mxu0 0.0
    %324 = vmatpush.msra.mxu0 0.0
    %325 = vmatpush.msra.mxu0 0.0
    %326 = vmatpush.msra.mxu0 0.0
    %327 = vmatpush.msra.mxu0 0.0
    %328 = vmatpush.msra.mxu0 0.0
    %329 = vmatpush.msra.mxu0 0.0
    %330 = vmatpush.msra.mxu0 0.0
    %331 = vmatpush.msra.mxu0 0.0
    %332 = vmatpush.msra.mxu0 0.0
    %333 = vmatpush.msra.mxu0 0.0
    %334 = vmatpush.msra.mxu0 0.0
    %335 = vmatpush.msra.mxu0 0.0
    %336 = vmatpush.msra.mxu0 0.0
    %337 = vmatpush.msra.mxu0 0.0
    %338 = vmatpush.msra.mxu0 %v33
    %339 = vmatmul.f32.gmra.mxu0 %v321
    %v340 = vpop.f32.mrf.mxu0
    %v341 = vadd.f32 0.0, %v340
    %342 = vdwg.mxu0
    %v344 = vsel %vm254, %v38, 0
    %346 = vmatpush.msra.mxu0 0.0
    %347 = vmatpush.msra.mxu0 0.0
    %348 = vmatpush.msra.mxu0 0.0
    %349 = vmatpush.msra.mxu0 0.0
    %350 = vmatpush.msra.mxu0 0.0
    %351 = vmatpush.msra.mxu0 0.0
    %352 = vmatpush.msra.mxu0 0.0
    %353 = vmatpush.msra.mxu0 0.0
    %354 = vmatpush.msra.mxu0 0.0
    %355 = vmatpush.msra.mxu0 0.0
    %356 = vmatpush.msra.mxu0 0.0
    %357 = vmatpush.msra.mxu0 0.0
    %358 = vmatpush.msra.mxu0 0.0
    %359 = vmatpush.msra.mxu0 0.0
    %360 = vmatpush.msra.mxu0 0.0
    %361 = vmatpush.msra.mxu0 %v33
    %362 = vmatmul.f32.gmra.mxu0 %v344
    %v363 = vpop.f32.mrf.mxu0
    %v364 = vadd.f32 0.0, %v363
    %365 = vdwg.mxu0
    %v367 = vsel %vm254, %v37, 0
    %369 = vmatpush.msra.mxu0 0.0
    %370 = vmatpush.msra.mxu0 0.0
    %371 = vmatpush.msra.mxu0 0.0
    %372 = vmatpush.msra.mxu0 0.0
    %373 = vmatpush.msra.mxu0 0.0
    %374 = vmatpush.msra.mxu0 0.0
    %375 = vmatpush.msra.mxu0 0.0
    %376 = vmatpush.msra.mxu0 0.0
    %377 = vmatpush.msra.mxu0 0.0
    %378 = vmatpush.msra.mxu0 0.0
    %379 = vmatpush.msra.mxu0 0.0
    %380 = vmatpush.msra.mxu0 0.0
    %381 = vmatpush.msra.mxu0 0.0
    %382 = vmatpush.msra.mxu0 0.0
    %383 = vmatpush.msra.mxu0 0.0
    %384 = vmatpush.msra.mxu0 %v32
    %385 = vmatmul.f32.gmra.mxu0 %v367
    %v386 = vpop.f32.mrf.mxu0
    %v387 = vadd.f32 %v364, %v386
    %388 = vdwg.mxu0
    %v390 = vsel %vm254, %v40, 0
    %392 = vmatpush.msra.mxu0 0.0
    %393 = vmatpush.msra.mxu0 0.0
    %394 = vmatpush.msra.mxu0 0.0
    %395 = vmatpush.msra.mxu0 0.0
    %396 = vmatpush.msra.mxu0 0.0
    %397 = vmatpush.msra.mxu0 0.0
    %398 = vmatpush.msra.mxu0 0.0
    %399 = vmatpush.msra.mxu0 0.0
    %400 = vmatpush.msra.mxu0 0.0
    %401 = vmatpush.msra.mxu0 0.0
    %402 = vmatpush.msra.mxu0 0.0
    %403 = vmatpush.msra.mxu0 0.0
    %404 = vmatpush.msra.mxu0 0.0
    %405 = vmatpush.msra.mxu0 0.0
    %406 = vmatpush.msra.mxu0 0.0
    %407 = vmatpush.msra.mxu0 %v33
    %408 = vmatmul.f32.gmra.mxu0 %v390
    %v409 = vpop.f32.mrf.mxu0
    %v410 = vadd.f32 0.0, %v409
    %411 = vdwg.mxu0
    %v413 = vsel %vm254, %v39, 0
    %415 = vmatpush.msra.mxu0 0.0
    %416 = vmatpush.msra.mxu0 0.0
    %417 = vmatpush.msra.mxu0 0.0
    %418 = vmatpush.msra.mxu0 0.0
    %419 = vmatpush.msra.mxu0 0.0
    %420 = vmatpush.msra.mxu0 0.0
    %421 = vmatpush.msra.mxu0 0.0
    %422 = vmatpush.msra.mxu0 0.0
    %423 = vmatpush.msra.mxu0 0.0
    %424 = vmatpush.msra.mxu0 0.0
    %425 = vmatpush.msra.mxu0 0.0
    %426 = vmatpush.msra.mxu0 0.0
    %427 = vmatpush.msra.mxu0 0.0
    %428 = vmatpush.msra.mxu0 0.0
    %429 = vmatpush.msra.mxu0 0.0
    %430 = vmatpush.msra.mxu0 %v32
    %431 = vmatmul.f32.gmra.mxu0 %v413
    %v432 = vpop.f32.mrf.mxu0
    %v433 = vadd.f32 %v410, %v432
    %434 = vdwg.mxu0
    %v435 = vadd.f32 %v433, %v36
    %v437 = vperm.slane %v281, 0
    %v438 = vperm.slane %v281, 1
    %v441 = vadd.f32 %v437, %v284
    %v442 = vadd.f32 %v438, %v284
    %v443 = vmul.f32 %v441, 0.0625
    %v444 = vmul.f32 %v442, 0.0625
    %v446 = vperm.slane %v288, 0
    %v447 = vperm.slane %v288, 1
    %v450 = vadd.f32 %v446, %v292
    %v451 = vadd.f32 %v447, %v292
    %v452 = vmul.f32 %v450, 0.0625
    %v453 = vmul.f32 %v451, 0.0625
    %v454 = vmul.f32 %v443, %v443
    %v455 = vmul.f32 %v444, %v444
    %v456 = vsub.f32 %v452, %v454
    %v457 = vsub.f32 %v453, %v455
    %v458 = vadd.f32 %v456, 1e-05
    %v459 = vadd.f32 %v457, 1e-05
    %v460 = vrsqrt.pop %v458
    %v461 = vmul.f32 %v460, %v458
    %v462 = vmul.f32 %v461, %v460
    %v463 = vmul.f32 0.5, %v462
    %v464 = vsub.f32 1.5, %v463
    %v465 = vmul.f32 %v460, %v464
    %vm466 = vweird.f32 %v458
    %vm467 = vweird.f32 %v460
    %vm468 = vmor %vm466, %vm467
    %v469 = vsel %vm468, %v460, %v465
    %v470 = vrsqrt.pop %v459
    %v471 = vmul.f32 %v470, %v459
    %v472 = vmul.f32 %v471, %v470
    %v473 = vmul.f32 0.5, %v472
    %v474 = vsub.f32 1.5, %v473
    %v475 = vmul.f32 %v470, %v474
    %vm476 = vweird.f32 %v459
    %vm477 = vweird.f32 %v470
    %vm478 = vmor %vm476, %vm477
    %v479 = vsel %vm478, %v470, %v475
    %v481 = vrot.slane %v316, 1
    %v482 = vperm.slane %v316, 0
    %v483 = vperm.slane %v481, 0
    %v486 = vadd.f32 %v482, %v341
    %v487 = vadd.f32 %v483, %v341
    %v488 = vperm.slane %v387, 0
    %v489 = vmul.f32 %v443, %v488
    %v490 = vmul.f32 %v444, %v488
    %v491 = vsub.f32 %v486, %v489
    %v492 = vsub.f32 %v487, %v490
    %v493 = vmul.f32 %v469, %v491
    %v494 = vmul.f32 %v479, %v492
    %v495 = vperm.slane %v435, 0
    %v496 = vadd.f32 %v493, %v495
    %v497 = vadd.f32 %v494, %v495
    %498 = vst.msk [vmem:[#allocation2] sm:$0xff] %vm254, %v496
    %499 = vst.msk [vmem:[#allocation2 + $0x8] sm:$0xff] %vm254, %v497
    // Predicated region
    $region18: #{tpu_custom_call.1} parent=1 // pred_check
      _
    $region19: #{tpu_custom_call.1} parent=1 // pred_check_branch
      %501 = sbr.rel (0) target = $region21
    $region20: #{tpu_custom_call.1} parent=1 // pred_region
      %503 = vsyncadd [#allocation3], 0
      %s504 = sshll.u32 [#allocation2], 4
      %s505 = int_to_ptr.vmem [resolvable:$true] %s504
      %s506 = sshll.u32 %s4, 4
      %s507 = int_to_ptr.hbm [resolvable:$true] %s506
      %512 = dma.vmem_to_hbm [thread:$0]  %s505, 256, %s507, [#allocation3], 128, 128, 8
    $region21: #{tpu_custom_call.1} parent=1 // pred_fallthru
      _
    // Predicated region
    $region22: #{tpu_custom_call.1} parent=1 // pred_check
      _
    $region23: #{tpu_custom_call.1} parent=1 // pred_check_branch
      %514 = sbr.rel (0) target = $region25
    $region24: #{tpu_custom_call.1} parent=1 // pred_region
      %516 = dma.done [#allocation3], 256
    $region25: #{tpu_custom_call.1} parent=1 // pred_fallthru
      _
    %517 = vsyncpa [#allocation3], 1

</llo_original>
